<compile_context>
chip_gen: v5e
topology: v5e:2x2
jax: 0.10.0
libtpu: 0.0.40
codegen_flags: <defaults>
</compile_context>

<pallas_src>
import functools

import jax
import jax.numpy as jnp
from jax.experimental import pallas as pl
from jax.experimental.pallas import tpu as pltpu

LANES = 128


def _round_up(a: int, b: int) -> int:
    return ((a + b - 1) // b) * b


def _vmem_capacity_bytes(default: int = 64 << 20) -> int:
    """Physical VMEM per TensorCore; conservative (v7x) default if unknown."""
    try:
        info = pltpu.get_tpu_info()
        cap = getattr(info, "vmem_capacity_bytes", None)
        if cap:
            return int(cap)
    except Exception:
        pass
    return default


def _choose_tile_rows(rows_aligned: int, out_cols: int, in_itemsize: int,
                      budget_bytes: int, max_tile_rows: int,
                      row_align: int) -> int:
    """Pick a tile height (rows of 128 lanes) per grid step."""
    # Double-buffered input + output bytes per row of 128 elements.
    per_row = 2 * (LANES * in_itemsize + out_cols * LANES * 4)
    tile = budget_bytes // per_row
    tile = max(row_align, min(tile, max_tile_rows, rows_aligned))
    tile = (tile // row_align) * row_align

    # Guarantee >= 2 grid steps when possible so both v7x TensorCores get work
    # (dimension_semantics=("parallel",)); negligible cost on 1-TC chips.
    if rows_aligned >= 2 * row_align:
        half = ((rows_aligned // 2) // row_align) * row_align
        tile = min(tile, max(row_align, half))

    # Bound padding waste: shrink the tile while the padded tail exceeds
    # ~12.5% of the real rows (avoids ~2x traffic for rows just above a tile).
    def _pad(t: int) -> int:
        return _round_up(rows_aligned, t) - rows_aligned

    while tile > row_align and _pad(tile) * 8 > rows_aligned:
        tile = max(row_align, ((tile // 2) // row_align) * row_align)
    return tile


def _legendre_kernel(x_ref, o_ref, *, degree: int):
    """Evaluate P_0..P_degree on one lane-dense tile.

    x_ref: (tile_rows, 128) input tile (f32 or bf16) in VMEM
    o_ref: (degree + 1, tile_rows, 128) f32 in VMEM; o_ref[k] = P_k(x)
    """
    x = x_ref[...].astype(jnp.float32)          # cast is free VPU work
    p_m = jnp.ones_like(x)                      # P_0
    o_ref[0, :, :] = p_m
    if degree > 0:
        p = x                                   # P_1
        o_ref[1, :, :] = p
        for ii in range(1, degree):             # unrolled at trace time
            a = (2.0 * ii + 1.0) / (ii + 1.0)   # folded constants: no f32 div
            b = float(ii) / (ii + 1.0)          # in the kernel inner loop
            p_p = a * x * p - b * p_m
            o_ref[ii + 1, :, :] = p_p
            p_m = p
            p = p_p


def legendre_pallas(x: jax.Array, degree: int, *,
                    max_tile_rows: int = 2048,
                    as_poly_major: bool = False) -> jax.Array:
    """Pallas TPU implementation of Legendre.forward.

    Returns (N, degree+1) f32 (matching the PyTorch module). With
    as_poly_major=True, returns the kernel-native (degree+1, N) layout and
    skips the final transpose (consumers that can absorb it should use this).
    """
    if degree < 0:
        raise ValueError("degree must be >= 0")
    out_cols = degree + 1

    # Keep f32 / bf16 inputs in their dtype (cast happens inside the kernel);
    # anything else is promoted host-side.
    if x.dtype not in (jnp.float32, jnp.bfloat16):
        x = x.astype(jnp.float32)
    x_flat = jnp.reshape(x, (-1,))
    n = x_flat.shape[0]
    in_itemsize = jnp.dtype(x_flat.dtype).itemsize
    row_align = 8 if in_itemsize == 4 else 16   # sublane packing for bf16

    # Lane-dense rows of 128 elements.
    rows = max(1, -(-n // LANES))
    rows_aligned = _round_up(rows, row_align)

    # Generation-aware tile sizing (v5e/v6e: 128 MiB VMEM, v7x: 64 MiB/TC).
    vmem_cap = _vmem_capacity_bytes()
    budget = max(8 << 20, min(28 << 20, vmem_cap // 3))
    tile_rows = _choose_tile_rows(rows_aligned, out_cols, in_itemsize,
                                  budget, max_tile_rows, row_align)

    rows_pad = _round_up(rows_aligned, tile_rows)
    n_pad = rows_pad * LANES
    if n_pad != n:
        x_flat = jnp.pad(x_flat, (0, n_pad - n))   # pad rows eval P_k(0); sliced off
    x2d = x_flat.reshape(rows_pad, LANES)

    # Actual per-grid-step VMEM footprint (double-buffered in/out + live temps),
    # used to set an explicit vmem limit (v5e's 16 MiB scoped default must not bind).
    footprint = (2 * (tile_rows * LANES * in_itemsize
                      + out_cols * tile_rows * LANES * 4)
                 + 4 * tile_rows * LANES * 4)
    vmem_limit = max(32 << 20, footprint + (4 << 20))
    cap_limit = int(0.95 * vmem_cap)
    if vmem_limit > cap_limit:
        if footprint + (2 << 20) > cap_limit:
            raise ValueError(
                f"Per-tile VMEM footprint ({footprint} B) exceeds device VMEM "
                f"({vmem_cap} B); reduce degree or split the polynomial axis.")
        vmem_limit = cap_limit

    flops = 4 * max(degree - 1, 0) * n_pad
    bytes_accessed = n_pad * in_itemsize + out_cols * n_pad * 4
    cost = pl.CostEstimate(flops=flops, transcendentals=0,
                           bytes_accessed=bytes_accessed)

    kernel = functools.partial(_legendre_kernel, degree=degree)

    out = pl.pallas_call(
        kernel,
        out_shape=jax.ShapeDtypeStruct((out_cols, rows_pad, LANES), jnp.float32),
        grid_spec=pltpu.PrefetchScalarGridSpec(
            num_scalar_prefetch=0,
            grid=(rows_pad // tile_rows,),
            in_specs=[pl.BlockSpec((tile_rows, LANES), lambda i: (i, 0))],
            out_specs=pl.BlockSpec((out_cols, tile_rows, LANES),
                                   lambda i: (0, i, 0)),
        ),
        compiler_params=pltpu.CompilerParams(
            dimension_semantics=("parallel",),
            vmem_limit_bytes=int(vmem_limit)),
        cost_estimate=cost,
    )(x2d)

    # (degree+1, rows_pad, 128) -> (degree+1, N): free contiguous reshape (+ slice
    # only when N needed padding).
    out = out.reshape(out_cols, n_pad)
    if n_pad != n:
        out = out[:, :n]
    if as_poly_major:
        return out
    # Module contract is (N, degree+1); this layout-only transpose is the one
    # remaining extra HBM pass — use as_poly_major=True to let a consumer absorb it.
    return out.T


def legendre_ref(x: jax.Array, degree: int) -> jax.Array:
    """Pure-JAX reference mirroring the PyTorch module (keeps the divide)."""
    xf = jnp.reshape(x, (-1, 1)).astype(jnp.float32)
    cols = [jnp.ones_like(xf)]
    if degree > 0:
        p = xf
        cols.append(p)
        p_m = cols[0]
        for ii in range(1, degree):
            p_p = ((2 * ii + 1) * xf * p - ii * p_m) / (ii + 1)
            cols.append(p_p)
            p_m = p
            p = p_p
    return jnp.concatenate(cols, axis=1)


if __name__ == "__main__":
    key = jax.random.PRNGKey(0)
    # Small example input consistent with the module (any shape; it is flattened).
    x = jax.random.uniform(key, (2, 4, 16, 16), dtype=jnp.float32,
                           minval=-1.0, maxval=1.0)

    # Primary check: degree = 5.
    degree = 5
    out = jax.block_until_ready(legendre_pallas(x, degree))
    ref = legendre_ref(x, degree)
    assert out.shape == (x.size, degree + 1), out.shape
    assert out.dtype == jnp.float32
    assert jnp.allclose(out, ref, atol=1e-5, rtol=1e-5), \
        float(jnp.max(jnp.abs(out - ref)))

    # Edge cases: degree = 0 and degree = 1.
    for d in (0, 1):
        o = jax.block_until_ready(legendre_pallas(x, d))
        r = legendre_ref(x, d)
        assert o.shape == (x.size, d + 1), o.shape
        assert jnp.allclose(o, r, atol=1e-5, rtol=1e-5)

    # Ragged size (N not a multiple of 128) exercises the padding/slice path.
    x2 = jax.random.uniform(jax.random.PRNGKey(1), (3, 5, 7), dtype=jnp.float32,
                            minval=-1.0, maxval=1.0)
    o2 = jax.block_until_ready(legendre_pallas(x2, 4))
    r2 = legendre_ref(x2, 4)
    assert o2.shape == (x2.size, 5), o2.shape
    assert jnp.allclose(o2, r2, atol=1e-5, rtol=1e-5)

    print("KERNEL_OK")
</pallas_src>

<mosaic_0001>
module attributes {stable_mosaic.version = 11 : i64} {
  func.func @_legendre_kernel(%arg0: i32, %arg1: memref<8x128xf32, #tpu.memory_space<vmem>>, %arg2: memref<6x8x128xf32, #tpu.memory_space<vmem>>) attributes {dimension_semantics = [#tpu.dimension_semantics<parallel>], iteration_bounds = array<i64: 2>, scalar_prefetch = 0 : i64, scratch_operands = 0 : i64, tpu.core_type = #tpu.core_type<tc>, window_params = [{transform_indices = @transform_0, window_bounds = array<i64: 8, 128>}, {transform_indices = @transform_1, window_bounds = array<i64: 6, 8, 128>}]} {
    %c0 = arith.constant 0 : index
    %c0_0 = arith.constant 0 : index
    %0 = vector.load %arg1[%c0, %c0_0] : memref<8x128xf32, #tpu.memory_space<vmem>>, vector<8x128xf32>
    %cst = arith.constant 1.000000e+00 : f32
    %1 = vector.broadcast %cst : f32 to vector<8x128xf32>
    %c0_1 = arith.constant 0 : index
    %c0_2 = arith.constant 0 : index
    %c0_3 = arith.constant 0 : index
    %2 = vector.load %arg2[%c0_1, %c0_2, %c0_3] : memref<6x8x128xf32, #tpu.memory_space<vmem>>, vector<1x8x128xf32>
    %3 = vector.shape_cast %2 : vector<1x8x128xf32> to vector<8x128xf32>
    %4 = vector.shape_cast %1 : vector<8x128xf32> to vector<1x8x128xf32>
    tpu.vector_store %arg2[%c0_1, %c0_2, %c0_3], %4 {strides = array<i32>} : memref<6x8x128xf32, #tpu.memory_space<vmem>>, vector<1x8x128xf32>,
    %c1 = arith.constant 1 : index
    %c0_4 = arith.constant 0 : index
    %c0_5 = arith.constant 0 : index
    %5 = vector.load %arg2[%c1, %c0_4, %c0_5] : memref<6x8x128xf32, #tpu.memory_space<vmem>>, vector<1x8x128xf32>
    %6 = vector.shape_cast %5 : vector<1x8x128xf32> to vector<8x128xf32>
    %7 = vector.shape_cast %0 : vector<8x128xf32> to vector<1x8x128xf32>
    tpu.vector_store %arg2[%c1, %c0_4, %c0_5], %7 {strides = array<i32>} : memref<6x8x128xf32, #tpu.memory_space<vmem>>, vector<1x8x128xf32>,
    %cst_6 = arith.constant 1.500000e+00 : f32
    %8 = vector.broadcast %cst_6 : f32 to vector<8x128xf32>
    %9 = arith.mulf %8, %0 : vector<8x128xf32>
    %10 = arith.mulf %9, %0 : vector<8x128xf32>
    %cst_7 = arith.constant 5.000000e-01 : f32
    %11 = vector.broadcast %cst_7 : f32 to vector<8x128xf32>
    %12 = arith.mulf %11, %1 : vector<8x128xf32>
    %13 = arith.subf %10, %12 : vector<8x128xf32>
    %c2 = arith.constant 2 : index
    %c0_8 = arith.constant 0 : index
    %c0_9 = arith.constant 0 : index
    %14 = vector.load %arg2[%c2, %c0_8, %c0_9] : memref<6x8x128xf32, #tpu.memory_space<vmem>>, vector<1x8x128xf32>
    %15 = vector.shape_cast %14 : vector<1x8x128xf32> to vector<8x128xf32>
    %16 = vector.shape_cast %13 : vector<8x128xf32> to vector<1x8x128xf32>
    tpu.vector_store %arg2[%c2, %c0_8, %c0_9], %16 {strides = array<i32>} : memref<6x8x128xf32, #tpu.memory_space<vmem>>, vector<1x8x128xf32>,
    %cst_10 = arith.constant 1.66666663 : f32
    %17 = vector.broadcast %cst_10 : f32 to vector<8x128xf32>
    %18 = arith.mulf %17, %0 : vector<8x128xf32>
    %19 = arith.mulf %18, %13 : vector<8x128xf32>
    %cst_11 = arith.constant 0.666666686 : f32
    %20 = vector.broadcast %cst_11 : f32 to vector<8x128xf32>
    %21 = arith.mulf %20, %0 : vector<8x128xf32>
    %22 = arith.subf %19, %21 : vector<8x128xf32>
    %c3 = arith.constant 3 : index
    %c0_12 = arith.constant 0 : index
    %c0_13 = arith.constant 0 : index
    %23 = vector.load %arg2[%c3, %c0_12, %c0_13] : memref<6x8x128xf32, #tpu.memory_space<vmem>>, vector<1x8x128xf32>
    %24 = vector.shape_cast %23 : vector<1x8x128xf32> to vector<8x128xf32>
    %25 = vector.shape_cast %22 : vector<8x128xf32> to vector<1x8x128xf32>
    tpu.vector_store %arg2[%c3, %c0_12, %c0_13], %25 {strides = array<i32>} : memref<6x8x128xf32, #tpu.memory_space<vmem>>, vector<1x8x128xf32>,
    %cst_14 = arith.constant 1.750000e+00 : f32
    %26 = vector.broadcast %cst_14 : f32 to vector<8x128xf32>
    %27 = arith.mulf %26, %0 : vector<8x128xf32>
    %28 = arith.mulf %27, %22 : vector<8x128xf32>
    %cst_15 = arith.constant 7.500000e-01 : f32
    %29 = vector.broadcast %cst_15 : f32 to vector<8x128xf32>
    %30 = arith.mulf %29, %13 : vector<8x128xf32>
    %31 = arith.subf %28, %30 : vector<8x128xf32>
    %c4 = arith.constant 4 : index
    %c0_16 = arith.constant 0 : index
    %c0_17 = arith.constant 0 : index
    %32 = vector.load %arg2[%c4, %c0_16, %c0_17] : memref<6x8x128xf32, #tpu.memory_space<vmem>>, vector<1x8x128xf32>
    %33 = vector.shape_cast %32 : vector<1x8x128xf32> to vector<8x128xf32>
    %34 = vector.shape_cast %31 : vector<8x128xf32> to vector<1x8x128xf32>
    tpu.vector_store %arg2[%c4, %c0_16, %c0_17], %34 {strides = array<i32>} : memref<6x8x128xf32, #tpu.memory_space<vmem>>, vector<1x8x128xf32>,
    %cst_18 = arith.constant 1.800000e+00 : f32
    %35 = vector.broadcast %cst_18 : f32 to vector<8x128xf32>
    %36 = arith.mulf %35, %0 : vector<8x128xf32>
    %37 = arith.mulf %36, %31 : vector<8x128xf32>
    %cst_19 = arith.constant 8.000000e-01 : f32
    %38 = vector.broadcast %cst_19 : f32 to vector<8x128xf32>
    %39 = arith.mulf %38, %22 : vector<8x128xf32>
    %40 = arith.subf %37, %39 : vector<8x128xf32>
    %c5 = arith.constant 5 : index
    %c0_20 = arith.constant 0 : index
    %c0_21 = arith.constant 0 : index
    %41 = vector.load %arg2[%c5, %c0_20, %c0_21] : memref<6x8x128xf32, #tpu.memory_space<vmem>>, vector<1x8x128xf32>
    %42 = vector.shape_cast %41 : vector<1x8x128xf32> to vector<8x128xf32>
    %43 = vector.shape_cast %40 : vector<8x128xf32> to vector<1x8x128xf32>
    tpu.vector_store %arg2[%c5, %c0_20, %c0_21], %43 {strides = array<i32>} : memref<6x8x128xf32, #tpu.memory_space<vmem>>, vector<1x8x128xf32>,
    return
  }
  func.func @transform_0(%arg0: i32) -> (i32, i32) {
    %c0_i32 = arith.constant 0 : i32
    %c0_i32_0 = arith.constant 0 : i32
    return %arg0, %c0_i32 : i32, i32
  }
  func.func @transform_1(%arg0: i32) -> (i32, i32, i32) {
    %c0_i32 = arith.constant 0 : i32
    %c0_i32_0 = arith.constant 0 : i32
    %c0_i32_1 = arith.constant 0 : i32
    return %c0_i32, %arg0, %c0_i32_0 : i32, i32, i32
  }
}

</mosaic_0001>

<llo_original>
// kernel: tpu_custom_call.1
$region0: #{tpu_custom_call.1}
  #allocation0 [shape = 'u32[]', space=smem, size = 0x4, offset = 0x4, fixed_abs, tag = 'smem constant byte address 0x4 - core index']
  #allocation1 [shape = 'u32[72,128]{1,0:T(1,128)}', space=vmem, size = 0x9000, scoped, tag = 'internal scratch']
  %s0 = inlined_call_operand.hbm [shape: f32[16,128], index: 0, kind: input, shape index: {}]
  %s1 = inlined_call_operand.hbm [shape: f32[6,16,128], index: 1, kind: output, shape index: {}]
  %s2 = sld [smem:[#allocation0]]
  $region41: #{tpu_custom_call.1} parent=0
    _
  %s4 = ssub.s32 1, %s2
  %s5 = scalar_select 0, %s4, %s2
  $region1: #{tpu_custom_call.1} parent=0
    #allocation2 [shape = 'u8[8192]{0}', space=vmem, size = 0x2000, scoped, tag = 'input window, operand 0']
    #allocation3 [shape = 's32[2]{0}', space=sflag, size = 0x8, scoped, tag = 'scoped memory for tpu_custom_call.1']
    #allocation4 [shape = 's32[2]{0}', space=sflag, size = 0x8, scoped, tag = 'scoped memory for tpu_custom_call.1']
    #allocation5 [shape = 'u8[49152]{0}', space=vmem, size = 0xc000, scoped, tag = 'output window, operand 0']
    %6 = vsyncpa [#allocation3], 0
    %s7 = scalar_lea.sflag [#allocation3], 1
    %8 = vsyncpa %s7, 0
    %9 = vsyncpa [#allocation4], 0
    %s10 = scalar_lea.sflag [#allocation4], 1
    %11 = vsyncpa %s10, 0
    loop: start=0, step=1, limit=4
    $region2: #{tpu_custom_call.1} parent=1 // loop_pre_header
      _
    $region3: #{tpu_custom_call.1} parent=1 // loop_header
      %s13 = sphi 0, %s17
      %p14 = scmp.ge.s32.totalorder %s13, 4
      %s23 = sphi 0, %s25
      %s26 = sphi 0, %s23
      %s27 = sphi 0, %s26
      %s43 = sphi 0, %s27
      %s49 = sphi 0, %s51
      %s52 = sphi 0, %s49
      %s53 = sphi 0, %s52
      %s69 = sphi 0, %s53
    $region4: #{tpu_custom_call.1} parent=1 // loop_header_branch
      %16 = sbr.rel (%p14) target = $region8
    $region5: #{tpu_custom_call.1} parent=1 // loop_body
      %s18 = ssub.s32 %s13, 1
      %s19 = ssub.s32 %s13, 2
      %s20 = sadd.s32 %s13, 1
      %s21 = ssub.s32 %s13, %s20
      %p22 = scmp.eq.s32.totalorder %s21, 0
      %s24 = sadd.s32 %s23, 1
      %s25 = scalar_select %p22, %s23, %s24
      %p28 = pneg %p22
      %p29 = scmp.eq.s32.totalorder %s13, 1
      %p30 = por %p28, %p29
      %p31 = scmp.ne.s32.totalorder %s23, %s26
      %p32 = scmp.eq.s32.totalorder %s13, 0
      %p33 = por %p31, %p32
      %p34 = scmp.ne.s32.totalorder %s23, %s26
      %p35 = scmp.eq.s32.totalorder %s18, 1
      %p36 = por %p34, %p35
      %p37 = scmp.ne.s32.totalorder %s26, %s27
      %p38 = scmp.eq.s32.totalorder %s18, 0
      %p39 = por %p37, %p38
      %p40 = scmp.ne.s32.totalorder %s26, %s27
      %p41 = scmp.eq.s32.totalorder %s19, 1
      %p42 = por %p40, %p41
      %p44 = scmp.ne.s32.totalorder %s27, %s43
      %p45 = scmp.eq.s32.totalorder %s19, 0
      %p46 = por %p44, %p45
      %s47 = ssub.s32 %s13, %s20
      %p48 = scmp.eq.s32.totalorder %s47, 0
      %s50 = sadd.s32 %s49, 1
      %s51 = scalar_select %p48, %s49, %s50
      %p54 = pneg %p48
      %p55 = scmp.eq.s32.totalorder %s13, 1
      %p56 = por %p54, %p55
      %p57 = scmp.ne.s32.totalorder %s49, %s52
      %p58 = scmp.eq.s32.totalorder %s13, 0
      %p59 = por %p57, %p58
      %p60 = scmp.ne.s32.totalorder %s49, %s52
      %p61 = scmp.eq.s32.totalorder %s18, 1
      %p62 = por %p60, %p61
      %p63 = scmp.ne.s32.totalorder %s52, %s53
      %p64 = scmp.eq.s32.totalorder %s18, 0
      %p65 = por %p63, %p64
      %p66 = scmp.ne.s32.totalorder %s52, %s53
      %p67 = scmp.eq.s32.totalorder %s19, 1
      %p68 = por %p66, %p67
      %p70 = scmp.ne.s32.totalorder %s53, %s69
      %p71 = scmp.eq.s32.totalorder %s19, 0
      %p72 = por %p70, %p71
      %p73 = scmp.le.s32.totalorder 1, %s13
      %p74 = scmp.lt.s32.totalorder %s13, 3
      %p75 = pnand %p73, %p74
      %p76 = pneg %p75
      // Predicated region
      $region9: #{tpu_custom_call.1} parent=5 // pred_check
        _
      $region10: #{tpu_custom_call.1} parent=5 // pred_check_branch
        %78 = sbr.rel (%p75) target = $region12
      $region11: #{tpu_custom_call.1} parent=5 // pred_region
        %s79 = ssub.s32 %s13, 1
      $region12: #{tpu_custom_call.1} parent=5 // pred_fallthru
        _
      %p80 = scmp.lt.s32.totalorder %s13, 2
      // Predicated region
      $region13: #{tpu_custom_call.1} parent=5 // pred_check
        %p81 = pneg %p80
      $region14: #{tpu_custom_call.1} parent=5 // pred_check_branch
        %83 = sbr.rel (%p81) target = $region16
      $region15: #{tpu_custom_call.1} parent=5 // pred_region
        // Predicated region
        $region17: #{tpu_custom_call.1} parent=15 // pred_check
          %p84 = pneg %p33
        $region18: #{tpu_custom_call.1} parent=15 // pred_check_branch
          %86 = sbr.rel (%p84) target = $region20
        $region19: #{tpu_custom_call.1} parent=15 // pred_region
          %s87 = sand.u32 %s23, 1
          %s88 = scalar_lea.sflag [#allocation3], %s87
          %s89 = sand.u32 %s23, 1
          %s90 = smul.addr %s89, 8
          %s91 = scalar_lea.vmem [#allocation2], %s90
          %93 = vsyncadd %s88, 0
          %s94 = smul.addr %s13, 8
          %s95 = scalar_lea.hbm %s0, %s94
          %s97 = sshll.u32 %s95, 4
          %s98 = int_to_ptr.hbm [resolvable:$true] %s97
          %s99 = sshll.u32 %s91, 4
          %s100 = int_to_ptr.vmem [resolvable:$true] %s99
          %102 = dma.hbm_to_vmem [thread:$0]  %s98, 128, %s100, %s88
        $region20: #{tpu_custom_call.1} parent=15 // pred_fallthru
          _
      $region16: #{tpu_custom_call.1} parent=5 // pred_fallthru
        _
      %p103 = scmp.le.s32.totalorder 1, %s13
      %p104 = scmp.lt.s32.totalorder %s13, 3
      %p105 = pnand %p103, %p104
      %p106 = pneg %p105
      // Predicated region
      $region21: #{tpu_custom_call.1} parent=5 // pred_check
        _
      $region22: #{tpu_custom_call.1} parent=5 // pred_check_branch
        %108 = sbr.rel (%p105) target = $region24
      $region23: #{tpu_custom_call.1} parent=5 // pred_region
        %s109 = ssub.s32 %s13, 1
        %s110 = sand.u32 %s26, 1
        %s111 = scalar_lea.sflag [#allocation3], %s110
        %s112 = sand.u32 %s26, 1
        %s113 = smul.addr %s112, 8
        %s114 = scalar_lea.vmem [#allocation2], %s113
        // Predicated region
        $region25: #{tpu_custom_call.1} parent=23 // pred_check
          %p115 = pneg %p39
        $region26: #{tpu_custom_call.1} parent=23 // pred_check_branch
          %117 = sbr.rel (%p115) target = $region28
        $region27: #{tpu_custom_call.1} parent=23 // pred_region
          %119 = dma.done %s111, 128
        $region28: #{tpu_custom_call.1} parent=23 // pred_fallthru
          _
        %s120 = sand.u32 %s26, 1
        %s121 = scalar_lea.sflag [#allocation3], %s120
        %s122 = sand.u32 %s26, 1
        %s123 = smul.addr %s122, 8
        %s124 = scalar_lea.vmem [#allocation2], %s123
        %p125 = pneg %p39
        %p126 = pneg %p36
        %p127 = pneg %p65
        %p128 = pneg %p62
        %s129 = sand.u32 %s52, 1
        %s130 = scalar_lea.sflag [#allocation4], %s129
        %s131 = sand.u32 %s52, 1
        %s132 = smul.addr %s131, 48
        %s133 = scalar_lea.vmem [#allocation5], %s132
        %v134 = vld [vmem:[%s114] sm:$0xff]
        %135 = vst [vmem:[%s133] sm:$0xff] 1.0
        %s136 = scalar_lea.vmem %s133, 8 [#allocation5]
        %137 = vst [vmem:[%s136] sm:$0xff] %v134
        %v138 = vmul.f32 %v134, 1.5
        %v139 = vmul.f32 %v138, %v134
        %v140 = vsub.f32 %v139, 0.5
        %s141 = scalar_lea.vmem %s133, 16 [#allocation5]
        %142 = vst [vmem:[%s141] sm:$0xff] %v140
        %v143 = vmul.f32 %v134, 1.6666666
        %v144 = vmul.f32 %v143, %v140
        %v145 = vmul.f32 %v134, 0.6666667
        %v146 = vsub.f32 %v144, %v145
        %s147 = scalar_lea.vmem %s133, 24 [#allocation5]
        %148 = vst [vmem:[%s147] sm:$0xff] %v146
        %v149 = vmul.f32 %v134, 1.75
        %v150 = vmul.f32 %v149, %v146
        %v151 = vmul.f32 %v140, 0.75
        %v152 = vsub.f32 %v150, %v151
        %s153 = scalar_lea.vmem %s133, 32 [#allocation5]
        %154 = vst [vmem:[%s153] sm:$0xff] %v152
        %v155 = vmul.f32 %v134, 1.8
        %v156 = vmul.f32 %v155, %v152
        %v157 = vmul.f32 %v146, 0.8
        %v158 = vsub.f32 %v156, %v157
        %s159 = scalar_lea.vmem %s133, 40 [#allocation5]
        %160 = vst [vmem:[%s159] sm:$0xff] %v158
        %s161 = sand.u32 %s52, 1
        %s162 = scalar_lea.sflag [#allocation4], %s161
        %s163 = sand.u32 %s52, 1
        %s164 = smul.addr %s163, 48
        %s165 = scalar_lea.vmem [#allocation5], %s164
        // Predicated region
        $region29: #{tpu_custom_call.1} parent=23 // pred_check
          %p166 = pneg %p62
        $region30: #{tpu_custom_call.1} parent=23 // pred_check_branch
          %168 = sbr.rel (%p166) target = $region32
        $region31: #{tpu_custom_call.1} parent=23 // pred_region
          %170 = vsyncadd %s162, 0
          %s171 = smul.addr %s18, 8
          %s172 = scalar_lea.hbm %s1, %s171
          %s173 = sshll.u32 %s165, 4
          %s174 = int_to_ptr.vmem [resolvable:$true] %s173
          %s175 = sshll.u32 %s172, 4
          %s176 = int_to_ptr.hbm [resolvable:$true] %s175
          %181 = dma.vmem_to_hbm [thread:$0]  %s174, 768, %s176, %s162, 128, 256, 8
        $region32: #{tpu_custom_call.1} parent=23 // pred_fallthru
          _
      $region24: #{tpu_custom_call.1} parent=5 // pred_fallthru
        _
      %p182 = scmp.le.s32.totalorder 2, %s13
      // Predicated region
      $region33: #{tpu_custom_call.1} parent=5 // pred_check
        %p183 = pneg %p182
      $region34: #{tpu_custom_call.1} parent=5 // pred_check_branch
        %185 = sbr.rel (%p183) target = $region36
      $region35: #{tpu_custom_call.1} parent=5 // pred_region
        %s186 = ssub.s32 %s13, 2
        // Predicated region
        $region37: #{tpu_custom_call.1} parent=35 // pred_check
          %p187 = pneg %p68
        $region38: #{tpu_custom_call.1} parent=35 // pred_check_branch
          %189 = sbr.rel (%p187) target = $region40
        $region39: #{tpu_custom_call.1} parent=35 // pred_region
          %s190 = sand.u32 %s53, 1
          %s191 = scalar_lea.sflag [#allocation4], %s190
          %s192 = sand.u32 %s53, 1
          %s193 = smul.addr %s192, 48
          %s194 = scalar_lea.vmem [#allocation5], %s193
          %196 = dma.done %s191, 768
        $region40: #{tpu_custom_call.1} parent=35 // pred_fallthru
          _
      $region36: #{tpu_custom_call.1} parent=5 // pred_fallthru
        _
    $region6: #{tpu_custom_call.1} parent=1 // loop_footer
      %s17 = sadd.s32 1, %s13
    $region7: #{tpu_custom_call.1} parent=1 // loop_footer_branch
      %12 = sbr.rel target = $region3
    $region8: #{tpu_custom_call.1} parent=1 // loop_exit
      _
    %197 = vsyncpa [#allocation3], 1
    %s198 = scalar_lea.sflag [#allocation3], 1
    %199 = vsyncpa %s198, 1
    %200 = vsyncpa [#allocation4], 1
    %s201 = scalar_lea.sflag [#allocation4], 1
    %202 = vsyncpa %s201, 1

</llo_original>
